<compile_context>
chip_gen: v7x
topology: tpu7x:2x2x1
jax: 0.10.0
libtpu: 0.0.40
codegen_flags: <defaults>
</compile_context>

<pallas_src>
import jax
import jax.numpy as jnp
from jax import lax
from jax.experimental import pallas as pl
from jax.experimental.pallas import tpu as pltpu

KH1, SH1 = 4, 2          # conv1 kernel height / stride
KW2 = 4                  # conv2 kernel width
C1_OUT = 32
C2_OUT = 64
K1 = 16                  # per-tap channels: 12 conv1 taps + validity + bias-one + 2 zero
KF = KW2 * K1            # folded contraction = 64


# ---------------------------------------------------------------------------
# Kernel: one batch element per grid step
# ---------------------------------------------------------------------------
def _fused_conv_hswish_kernel(xw_ref, wf_ref, out_ref):
    """xw_ref : (1, 16, L+3) bf16  flattened, fully padded im2col slab
       wf_ref : (64, 64)     bf16  folded conv1*conv2 weights (+biases)
       out_ref: (1, 64, L)   f32   flattened output (row stride Wp2)
    """
    ncols = out_ref.shape[2]
    # Fold conv2's 4 width taps into the contraction: 4 lane-shifted views of the
    # 16-channel slab concatenated along K -> one (64,64) x (64,L) MXU dot.
    slab = jnp.concatenate(
        [xw_ref[0, :, kw:kw + ncols] for kw in range(KW2)], axis=0)       # (64, L)
    v2 = jnp.dot(wf_ref[...], slab, preferred_element_type=jnp.float32)   # (64, L)
    v4 = jnp.clip(v2 + 3.0, 0.0, 6.0)
    out_ref[0] = v2 * v4 * (1.0 / 6.0)        # single lane-dense whole-tile store


# ---------------------------------------------------------------------------
# Wrapper: im2col / weight folding + pallas_call
# ---------------------------------------------------------------------------
def model_forward(x_nchw, params):
    w1_pt, b1 = params["w1_pt"], params["b1"]        # (32,3,4,1), (32,)
    w2_pt, b2 = params["w2_pt"], params["b2"]        # (64,32,1,4), (64,)
    n, cin, h, w = x_nchw.shape
    assert cin == 3

    h1 = (h + 2 - KH1) // SH1 + 1                    # conv1 out height
    w1o = w + 2                                      # conv1 out width
    h2 = h1 + 2                                      # conv2 out height
    w2o = w1o - 1                                    # conv2 out width
    wp2 = w1o + 2                                    # conv2-padded v1 width (= w2o + 3)
    L = h2 * wp2                                     # flattened spatial extent
    La = L + (KW2 - 1)                               # room for the 3 static tap shifts

    # ---- im2col (cheap, wrapper-side XLA): 12 conv1 taps + validity channel ----
    xp = jnp.pad(x_nchw, ((0, 0), (0, 0), (1, 1), (1, 1)))            # (N,3,H+2,W+2)
    taps = jnp.stack(
        [xp[:, :, kh:kh + SH1 * h1:SH1, :] for kh in range(KH1)], axis=1
    )                                                                 # (N,4,3,H1,W1)
    taps = jnp.transpose(taps, (0, 3, 1, 2, 4)).reshape(n, h1, KH1 * cin, w1o)
    valid = jnp.ones((n, h1, 1, w1o), jnp.float32)                    # v1-validity (b1 gate)
    x13 = jnp.concatenate([taps, valid], axis=2)                      # (N,H1,13,W1)
    # bake conv2's zero padding of v1 in (rows 0/H2-1, cols 0/Wp2-1 all-zero)
    x13 = jnp.pad(x13, ((0, 0), (1, 1), (0, 0), (1, 1)))              # (N,H2,13,Wp2)
    bias1 = jnp.ones((n, h2, 1, wp2), jnp.float32)                    # always-1 (b2 carrier)
    zpad = jnp.zeros((n, h2, K1 - 14, wp2), jnp.float32)
    x16 = jnp.concatenate([x13, bias1, zpad], axis=2)                 # (N,H2,16,Wp2)
    xw = jnp.transpose(x16, (0, 2, 1, 3)).reshape(n, K1, L)           # channels first, flat rows
    xw = jnp.pad(xw, ((0, 0), (0, 0), (0, La - L))).astype(jnp.bfloat16)   # (N,16,La)

    # ---- fold conv1 (+b1) and conv2 (+b2) into one (64, 64) weight matrix ----
    w1a = jnp.transpose(w1_pt[:, :, :, 0], (0, 2, 1)).reshape(C1_OUT, KH1 * cin)
    w1a = jnp.concatenate(
        [w1a, b1[:, None], jnp.zeros((C1_OUT, K1 - KH1 * cin - 1), jnp.float32)],
        axis=1)                                                       # (32, 16) f32
    w2c = w2_pt[:, :, 0, :]                                           # (64, 32, 4)
    wf = jnp.einsum('ocw,ck->owk', w2c, w1a)                          # (64, 4, 16) f32
    wf = wf.at[:, 0, 13].set(b2)            # conv2 bias via always-1 channel (kw=0 only)
    wf = wf.reshape(C2_OUT, KF).astype(jnp.bfloat16)                  # (64, 64)

    flops = 2 * n * C2_OUT * KF * L
    bytes_accessed = xw.size * 2 + wf.size * 2 + n * C2_OUT * L * 4

    out_flat = pl.pallas_call(
        _fused_conv_hswish_kernel,
        out_shape=jax.ShapeDtypeStruct((n, C2_OUT, L), jnp.float32),
        grid=(n,),
        in_specs=[
            pl.BlockSpec((1, K1, La), lambda b: (b, 0, 0)),
            pl.BlockSpec((C2_OUT, KF), lambda b: (0, 0)),
        ],
        out_specs=pl.BlockSpec((1, C2_OUT, L), lambda b: (b, 0, 0)),
        compiler_params=pltpu.CompilerParams(
            dimension_semantics=("parallel",),
            vmem_limit_bytes=64 * 1024 * 1024),
        cost_estimate=pl.CostEstimate(
            flops=flops, transcendentals=0, bytes_accessed=bytes_accessed),
    )(xw, wf)

    # layout plumbing only: flat (row stride Wp2) -> NCHW, then .unsqueeze(-1)
    out = out_flat.reshape(n, C2_OUT, h2, wp2)[:, :, :, :w2o]
    return out[..., None]


# ---------------------------------------------------------------------------
# Deterministic params + pure-JAX (f32) reference for a correctness check
# ---------------------------------------------------------------------------
def init_params(key):
    k1, k2, k3, k4 = jax.random.split(key, 4)
    w1_pt = jax.random.normal(k1, (C1_OUT, 3, KH1, 1), jnp.float32) * 0.1
    b1 = jax.random.normal(k2, (C1_OUT,), jnp.float32) * 0.1
    w2_pt = jax.random.normal(k3, (C2_OUT, C1_OUT, 1, KW2), jnp.float32) * 0.05
    b2 = jax.random.normal(k4, (C2_OUT,), jnp.float32) * 0.05
    return {"w1_pt": w1_pt, "b1": b1, "w2_pt": w2_pt, "b2": b2}


def reference_forward(x_nchw, params):
    v1 = lax.conv_general_dilated(
        x_nchw, params["w1_pt"], window_strides=(2, 1), padding=((1, 1), (1, 1)),
        dimension_numbers=("NCHW", "OIHW", "NCHW")) + params["b1"][None, :, None, None]
    v2 = lax.conv_general_dilated(
        v1, params["w2_pt"], window_strides=(1, 1), padding=((1, 1), (1, 1)),
        dimension_numbers=("NCHW", "OIHW", "NCHW")) + params["b2"][None, :, None, None]
    v4 = jnp.clip(v2 + 3.0, 0.0, 6.0)
    return (v2 * v4 / 6.0)[..., None]


if __name__ == "__main__":
    key = jax.random.PRNGKey(0)
    pkey, xkey = jax.random.split(key)
    params = init_params(pkey)
    # Small input consistent with the module's NCHW (N, 3, H, W) contract.
    x = jax.random.normal(xkey, (2, 3, 16, 32), jnp.float32)

    out = jax.jit(model_forward)(x, params)
    out = jax.block_until_ready(out)

    # conv1: H1=(16+2-4)//2+1=8, W1=34 ; conv2: H2=10, W2=33 ; unsqueeze(-1)
    assert out.shape == (2, 64, 10, 33, 1), out.shape
    ref = reference_forward(x, params)
    max_err = float(jnp.max(jnp.abs(out - ref)))
    # bf16 MXU inputs with f32 accumulation vs an all-f32 reference.
    assert jnp.allclose(out, ref, rtol=2e-2, atol=2e-2), (
        f"mismatch vs JAX reference (max abs err {max_err})")
    print("KERNEL_OK")
</pallas_src>

<mosaic_0001>
module attributes {stable_mosaic.version = 11 : i64} {
  func.func @_fused_conv_hswish_kernel(%arg0: i32, %arg1: memref<1x16x363xbf16, #tpu.memory_space<vmem>>, %arg2: memref<64x64xbf16, #tpu.memory_space<vmem>>, %arg3: memref<1x64x360xf32, #tpu.memory_space<vmem>>) attributes {dimension_semantics = [#tpu.dimension_semantics<parallel>], iteration_bounds = array<i64: 2>, scalar_prefetch = 0 : i64, scratch_operands = 0 : i64, tpu.core_type = #tpu.core_type<tc>, window_params = [{transform_indices = @transform_0, window_bounds = array<i64: 1, 16, 363>}, {pipeline_mode = #tpu.pipeline_mode<synchronous>, transform_indices = @transform_1, window_bounds = array<i64: 64, 64>}, {transform_indices = @transform_2, window_bounds = array<i64: 1, 64, 360>}]} {
    %c0 = arith.constant 0 : index
    %c0_0 = arith.constant 0 : index
    %c0_1 = arith.constant 0 : index
    %0 = vector.load %arg1[%c0, %c0_0, %c0_1] : memref<1x16x363xbf16, #tpu.memory_space<vmem>>, vector<1x16x360xbf16>
    %1 = vector.shape_cast %0 : vector<1x16x360xbf16> to vector<16x360xbf16>
    %c0_2 = arith.constant 0 : index
    %c0_3 = arith.constant 0 : index
    %c1 = arith.constant 1 : index
    %2 = vector.load %arg1[%c0_2, %c0_3, %c1] : memref<1x16x363xbf16, #tpu.memory_space<vmem>>, vector<1x16x360xbf16>
    %3 = vector.shape_cast %2 : vector<1x16x360xbf16> to vector<16x360xbf16>
    %c0_4 = arith.constant 0 : index
    %c0_5 = arith.constant 0 : index
    %c2 = arith.constant 2 : index
    %4 = vector.load %arg1[%c0_4, %c0_5, %c2] : memref<1x16x363xbf16, #tpu.memory_space<vmem>>, vector<1x16x360xbf16>
    %5 = vector.shape_cast %4 : vector<1x16x360xbf16> to vector<16x360xbf16>
    %c0_6 = arith.constant 0 : index
    %c0_7 = arith.constant 0 : index
    %c3 = arith.constant 3 : index
    %6 = vector.load %arg1[%c0_6, %c0_7, %c3] : memref<1x16x363xbf16, #tpu.memory_space<vmem>>, vector<1x16x360xbf16>
    %7 = vector.shape_cast %6 : vector<1x16x360xbf16> to vector<16x360xbf16>
    %8 = tpu.concatenate %1, %3, %5, %7 in 0 : vector<16x360xbf16>, vector<16x360xbf16>, vector<16x360xbf16>, vector<16x360xbf16> -> vector<64x360xbf16>
    %c0_8 = arith.constant 0 : index
    %c0_9 = arith.constant 0 : index
    %9 = vector.load %arg2[%c0_8, %c0_9] : memref<64x64xbf16, #tpu.memory_space<vmem>>, vector<64x64xbf16>
    %cst = arith.constant dense<0.000000e+00> : vector<64x360xf32>
    %10 = tpu.matmul %9, %8, %cst {dimension_numbers = #tpu.dot_dimension_numbers<[1], [0], [0], [1], [0, 0, 1, 1], [], []>} : vector<64x64xbf16>, vector<64x360xbf16>, vector<64x360xf32> -> vector<64x360xf32>
    %cst_10 = arith.constant 3.000000e+00 : f32
    %11 = vector.broadcast %cst_10 : f32 to vector<64x360xf32>
    %12 = arith.addf %10, %11 : vector<64x360xf32>
    %cst_11 = arith.constant 0.000000e+00 : f32
    %cst_12 = arith.constant 6.000000e+00 : f32
    %13 = vector.broadcast %cst_11 : f32 to vector<64x360xf32>
    %14 = arith.maximumf %13, %12 : vector<64x360xf32>
    %15 = vector.broadcast %cst_12 : f32 to vector<64x360xf32>
    %16 = arith.minimumf %15, %14 : vector<64x360xf32>
    %17 = arith.mulf %10, %16 : vector<64x360xf32>
    %cst_13 = arith.constant 0.166666672 : f32
    %18 = vector.broadcast %cst_13 : f32 to vector<64x360xf32>
    %19 = arith.mulf %17, %18 : vector<64x360xf32>
    %c0_14 = arith.constant 0 : index
    %c0_15 = arith.constant 0 : index
    %c0_16 = arith.constant 0 : index
    %20 = vector.load %arg3[%c0_14, %c0_15, %c0_16] : memref<1x64x360xf32, #tpu.memory_space<vmem>>, vector<1x64x360xf32>
    %21 = vector.shape_cast %20 : vector<1x64x360xf32> to vector<64x360xf32>
    %22 = vector.shape_cast %19 : vector<64x360xf32> to vector<1x64x360xf32>
    tpu.vector_store %arg3[%c0_14, %c0_15, %c0_16], %22 {strides = array<i32>} : memref<1x64x360xf32, #tpu.memory_space<vmem>>, vector<1x64x360xf32>,
    return
  }
  func.func @transform_0(%arg0: i32) -> (i32, i32, i32) {
    %c0_i32 = arith.constant 0 : i32
    %c0_i32_0 = arith.constant 0 : i32
    %c0_i32_1 = arith.constant 0 : i32
    return %arg0, %c0_i32, %c0_i32_0 : i32, i32, i32
  }
  func.func @transform_1(%arg0: i32) -> (i32, i32) {
    %c0_i32 = arith.constant 0 : i32
    %c0_i32_0 = arith.constant 0 : i32
    %c0_i32_1 = arith.constant 0 : i32
    return %c0_i32, %c0_i32_0 : i32, i32
  }
  func.func @transform_2(%arg0: i32) -> (i32, i32, i32) {
    %c0_i32 = arith.constant 0 : i32
    %c0_i32_0 = arith.constant 0 : i32
    %c0_i32_1 = arith.constant 0 : i32
    return %arg0, %c0_i32, %c0_i32_0 : i32, i32, i32
  }
}

</mosaic_0001>

<llo_original>
// kernel: model_forward.1
$region0: #{model_forward.1}
  #allocation0 [shape = 'u32[]', space=smem, size = 0x4, offset = 0x4, fixed_abs, tag = 'smem constant byte address 0x4 - core index']
  #allocation1 [shape = 'u32[144,128]{1,0:T(1,128)}', space=vmem, size = 0x12000, scoped, tag = 'internal scratch']
  %s0 = inlined_call_operand.hbm [shape: bf16[2,16,363], index: 0, kind: input, shape index: {}]
  %s1 = inlined_call_operand.hbm [shape: bf16[64,64], index: 1, kind: input, shape index: {}]
  %s2 = inlined_call_operand.hbm [shape: f32[2,64,360], index: 2, kind: output, shape index: {}]
  %s3 = sld [smem:[#allocation0]]
  $region49: #{model_forward.1} parent=0
    _
  %s5 = ssub.s32 1, %s3
  %s6 = scalar_select 0, %s5, %s3
  $region1: #{model_forward.1} parent=0
    #allocation2 [shape = 'u8[24576]{0}', space=vmem, size = 0x6000, scoped, tag = 'input window, operand 0']
    #allocation3 [shape = 's32[2]{0}', space=sflag, size = 0x8, scoped, tag = 'scoped memory for model_forward.1']
    #allocation4 [shape = 's32[2]{0}', space=sflag, size = 0x8, scoped, tag = 'scoped memory for model_forward.1']
    #allocation5 [shape = 'u8[16384]{0}', space=vmem, size = 0x4000, scoped, tag = 'input window, operand 1, single buffered']
    #allocation6 [shape = 's32[1]{0}', space=sflag, size = 0x4, scoped, tag = 'scoped memory for model_forward.1']
    #allocation7 [shape = 'u8[196608]{0}', space=vmem, size = 0x30000, scoped, tag = 'output window, operand 0']
    %7 = vsyncpa [#allocation3], 0
    %s8 = scalar_lea.sflag [#allocation3], 1
    %9 = vsyncpa %s8, 0
    %10 = vsyncpa [#allocation6], 0
    %11 = vsyncpa [#allocation4], 0
    %s12 = scalar_lea.sflag [#allocation4], 1
    %13 = vsyncpa %s12, 0
    loop: start=0, step=1, limit=4
    $region2: #{model_forward.1} parent=1 // loop_pre_header
      _
    $region3: #{model_forward.1} parent=1 // loop_header
      %s15 = sphi 0, %s19
      %p16 = scmp.ge.s32.totalorder %s15, 4
      %s25 = sphi 0, %s27
      %s28 = sphi 0, %s25
      %s29 = sphi 0, %s28
      %s45 = sphi 0, %s29
      %s49 = sphi 0, %s49
      %s51 = sphi 0, %s49
      %s52 = sphi 0, %s51
      %s66 = sphi 0, %s52
      %s72 = sphi 0, %s74
      %s75 = sphi 0, %s72
      %s76 = sphi 0, %s75
      %s92 = sphi 0, %s76
    $region4: #{model_forward.1} parent=1 // loop_header_branch
      %18 = sbr.rel (%p16) target = $region8
    $region5: #{model_forward.1} parent=1 // loop_body
      %s20 = ssub.s32 %s15, 1
      %s21 = ssub.s32 %s15, 2
      %s22 = sadd.s32 %s15, 1
      %s23 = ssub.s32 %s15, %s22
      %p24 = scmp.eq.s32.totalorder %s23, 0
      %s26 = sadd.s32 %s25, 1
      %s27 = scalar_select %p24, %s25, %s26
      %p30 = pneg %p24
      %p31 = scmp.eq.s32.totalorder %s15, 1
      %p32 = por %p30, %p31
      %p33 = scmp.ne.s32.totalorder %s25, %s28
      %p34 = scmp.eq.s32.totalorder %s15, 0
      %p35 = por %p33, %p34
      %p36 = scmp.ne.s32.totalorder %s25, %s28
      %p37 = scmp.eq.s32.totalorder %s20, 1
      %p38 = por %p36, %p37
      %p39 = scmp.ne.s32.totalorder %s28, %s29
      %p40 = scmp.eq.s32.totalorder %s20, 0
      %p41 = por %p39, %p40
      %p42 = scmp.ne.s32.totalorder %s28, %s29
      %p43 = scmp.eq.s32.totalorder %s21, 1
      %p44 = por %p42, %p43
      %p46 = scmp.ne.s32.totalorder %s29, %s45
      %p47 = scmp.eq.s32.totalorder %s21, 0
      %p48 = por %p46, %p47
      %s50 = sadd.s32 %s49, 1
      %p53 = scmp.eq.s32.totalorder %s15, 1
      %p54 = scmp.ne.s32.totalorder %s49, %s51
      %p55 = scmp.eq.s32.totalorder %s15, 0
      %p56 = por %p54, %p55
      %p57 = scmp.ne.s32.totalorder %s49, %s51
      %p58 = scmp.eq.s32.totalorder %s20, 1
      %p59 = por %p57, %p58
      %p60 = scmp.ne.s32.totalorder %s51, %s52
      %p61 = scmp.eq.s32.totalorder %s20, 0
      %p62 = por %p60, %p61
      %p63 = scmp.ne.s32.totalorder %s51, %s52
      %p64 = scmp.eq.s32.totalorder %s21, 1
      %p65 = por %p63, %p64
      %p67 = scmp.ne.s32.totalorder %s52, %s66
      %p68 = scmp.eq.s32.totalorder %s21, 0
      %p69 = por %p67, %p68
      %s70 = ssub.s32 %s15, %s22
      %p71 = scmp.eq.s32.totalorder %s70, 0
      %s73 = sadd.s32 %s72, 1
      %s74 = scalar_select %p71, %s72, %s73
      %p77 = pneg %p71
      %p78 = scmp.eq.s32.totalorder %s15, 1
      %p79 = por %p77, %p78
      %p80 = scmp.ne.s32.totalorder %s72, %s75
      %p81 = scmp.eq.s32.totalorder %s15, 0
      %p82 = por %p80, %p81
      %p83 = scmp.ne.s32.totalorder %s72, %s75
      %p84 = scmp.eq.s32.totalorder %s20, 1
      %p85 = por %p83, %p84
      %p86 = scmp.ne.s32.totalorder %s75, %s76
      %p87 = scmp.eq.s32.totalorder %s20, 0
      %p88 = por %p86, %p87
      %p89 = scmp.ne.s32.totalorder %s75, %s76
      %p90 = scmp.eq.s32.totalorder %s21, 1
      %p91 = por %p89, %p90
      %p93 = scmp.ne.s32.totalorder %s76, %s92
      %p94 = scmp.eq.s32.totalorder %s21, 0
      %p95 = por %p93, %p94
      %p96 = scmp.le.s32.totalorder 1, %s15
      %p97 = scmp.lt.s32.totalorder %s15, 3
      %p98 = pnand %p96, %p97
      %p99 = pneg %p98
      // Predicated region
      $region9: #{model_forward.1} parent=5 // pred_check
        _
      $region10: #{model_forward.1} parent=5 // pred_check_branch
        %101 = sbr.rel (%p98) target = $region12
      $region11: #{model_forward.1} parent=5 // pred_region
        %s102 = ssub.s32 %s15, 1
        // Predicated region
        $region13: #{model_forward.1} parent=11 // pred_check
          %p103 = pneg %p62
        $region14: #{model_forward.1} parent=11 // pred_check_branch
          %105 = sbr.rel (%p103) target = $region16
        $region15: #{model_forward.1} parent=11 // pred_region
          %s107 = ssub.s32 512, 512
          %108 = vsyncadd [#allocation6], %s107
          %s109 = sshll.u32 [#allocation5], 4
          %s110 = int_to_ptr.vmem [resolvable:$true] %s109
          %115 = dma.hbm_to_vmem [thread:$0]  %s1, 512, %s110, [#allocation6], 64, 64, 4
        $region16: #{model_forward.1} parent=11 // pred_fallthru
          _
      $region12: #{model_forward.1} parent=5 // pred_fallthru
        _
      %p116 = scmp.lt.s32.totalorder %s15, 2
      // Predicated region
      $region17: #{model_forward.1} parent=5 // pred_check
        %p117 = pneg %p116
      $region18: #{model_forward.1} parent=5 // pred_check_branch
        %119 = sbr.rel (%p117) target = $region20
      $region19: #{model_forward.1} parent=5 // pred_region
        // Predicated region
        $region21: #{model_forward.1} parent=19 // pred_check
          %p120 = pneg %p35
        $region22: #{model_forward.1} parent=19 // pred_check_branch
          %122 = sbr.rel (%p120) target = $region24
        $region23: #{model_forward.1} parent=19 // pred_region
          %s123 = sand.u32 %s25, 1
          %s124 = scalar_lea.sflag [#allocation3], %s123
          %s125 = sand.u32 %s25, 1
          %s126 = smul.addr %s125, 24
          %s127 = scalar_lea.vmem [#allocation2], %s126
          %s129 = ssub.s32 384, 384
          %130 = vsyncadd %s124, %s129
          %s131 = smul.addr %s15, 6
          %s132 = smul.addr %s131, 64
          %s133 = scalar_lea.hbm %s0, %s132
          %s134 = sshll.u32 %s127, 4
          %s135 = int_to_ptr.vmem [resolvable:$true] %s134
          %140 = dma.hbm_to_vmem [thread:$0]  %s133, 384, %s135, %s124, 192, 192, 12
        $region24: #{model_forward.1} parent=19 // pred_fallthru
          _
      $region20: #{model_forward.1} parent=5 // pred_fallthru
        _
      %p141 = scmp.le.s32.totalorder 1, %s15
      %p142 = scmp.lt.s32.totalorder %s15, 3
      %p143 = pnand %p141, %p142
      %p144 = pneg %p143
      // Predicated region
      $region25: #{model_forward.1} parent=5 // pred_check
        _
      $region26: #{model_forward.1} parent=5 // pred_check_branch
        %146 = sbr.rel (%p143) target = $region28
      $region27: #{model_forward.1} parent=5 // pred_region
        %s147 = ssub.s32 %s15, 1
        %s148 = sand.u32 %s28, 1
        %s149 = scalar_lea.sflag [#allocation3], %s148
        %s150 = sand.u32 %s28, 1
        %s151 = smul.addr %s150, 24
        %s152 = scalar_lea.vmem [#allocation2], %s151
        // Predicated region
        $region29: #{model_forward.1} parent=27 // pred_check
          %p153 = pneg %p41
        $region30: #{model_forward.1} parent=27 // pred_check_branch
          %155 = sbr.rel (%p153) target = $region32
        $region31: #{model_forward.1} parent=27 // pred_region
          %156 = dma.done %s149, 384
        $region32: #{model_forward.1} parent=27 // pred_fallthru
          _
        // Predicated region
        $region33: #{model_forward.1} parent=27 // pred_check
          %p157 = pneg %p62
        $region34: #{model_forward.1} parent=27 // pred_check_branch
          %159 = sbr.rel (%p157) target = $region36
        $region35: #{model_forward.1} parent=27 // pred_region
          %160 = dma.done [#allocation6], 512
        $region36: #{model_forward.1} parent=27 // pred_fallthru
          _
        %s161 = sand.u32 %s28, 1
        %s162 = scalar_lea.sflag [#allocation3], %s161
        %s163 = sand.u32 %s28, 1
        %s164 = smul.addr %s163, 24
        %s165 = scalar_lea.vmem [#allocation2], %s164
        %p166 = pneg %p41
        %p167 = pneg %p38
        %p168 = pneg %p62
        %p169 = pneg %p59
        %p170 = pneg %p88
        %p171 = pneg %p85
        %s172 = sand.u32 %s75, 1
        %s173 = scalar_lea.sflag [#allocation4], %s172
        %s174 = sand.u32 %s75, 1
        %s175 = smul.addr %s174, 192
        %s176 = scalar_lea.vmem [#allocation7], %s175
        %v178 = vld [vmem:[%s152] sm:$0xff]
        %v179 = vld [vmem:[%s152 + $0x8] sm:$0xf]
        %v180 = vld [vmem:[%s152 + $0xc] sm:$0xff]
        %v181 = vld [vmem:[%s152 + $0x14] sm:$0xf]
        %v186 = vunpack.c.l.b16 %v178
        %v187 = vunpack.c.h.b16 %v178
        %v188 = vunpack.c.l.b16 %v179
        %v189 = vunpack.c.l.b16 %v180
        %v190 = vunpack.c.h.b16 %v180
        %v191 = vunpack.c.l.b16 %v181
        %v192 = vpack.c.b16 %v189, %v186
        %v193 = vpack.c.b16 %v190, %v187
        %v194 = vpack.c.b16 %v191, %v188
        %198 = vrot.lane.b32.xlu0 %v192, 127
        %v199 = vpop.permute.xlu0 %198
        %200 = vrot.lane.b32.xlu0 %v193, 127
        %v201 = vpop.permute.xlu0 %200
        %202 = vrot.lane.b32.xlu0 %v194, 127
        %v203 = vpop.permute.xlu0 %202
        %vm204 = vcmask 1039360
        %v205 = vsel %vm204, %v199, %v201
        %v206 = vsel %vm204, %v201, %v203
        %210 = vrot.lane.b32.xlu0 %v192, 126
        %v211 = vpop.permute.xlu0 %210
        %212 = vrot.lane.b32.xlu0 %v193, 126
        %v213 = vpop.permute.xlu0 %212
        %214 = vrot.lane.b32.xlu0 %v194, 126
        %v215 = vpop.permute.xlu0 %214
        %vm216 = vcmask 1031168
        %v217 = vsel %vm216, %v211, %v213
        %v218 = vsel %vm216, %v213, %v215
        %222 = vrot.lane.b32.xlu0 %v192, 125
        %v223 = vpop.permute.xlu0 %222
        %224 = vrot.lane.b32.xlu0 %v193, 125
        %v225 = vpop.permute.xlu0 %224
        %226 = vrot.lane.b32.xlu0 %v194, 125
        %v227 = vpop.permute.xlu0 %226
        %vm228 = vcmask 1022976
        %v229 = vsel %vm228, %v223, %v225
        %v230 = vsel %vm228, %v225, %v227
        %v234 = vld [vmem:[#allocation5] sm:$0xf]
        %v235 = vld [vmem:[#allocation5 + $0x4] sm:$0xf]
        %v236 = vld [vmem:[#allocation5 + $0x8] sm:$0xf]
        %v237 = vld [vmem:[#allocation5 + $0xc] sm:$0xf]
        %v238 = vld [vmem:[#allocation5 + $0x10] sm:$0xf]
        %v239 = vld [vmem:[#allocation5 + $0x14] sm:$0xf]
        %v240 = vld [vmem:[#allocation5 + $0x18] sm:$0xf]
        %v241 = vld [vmem:[#allocation5 + $0x1c] sm:$0xf]
        %v250 = vunpack.c.l.b16 %v234
        %v251 = vunpack.c.l.b16 %v235
        %v252 = vunpack.c.l.b16 %v236
        %v253 = vunpack.c.l.b16 %v237
        %v254 = vunpack.c.l.b16 %v238
        %v255 = vunpack.c.l.b16 %v239
        %v256 = vunpack.c.l.b16 %v240
        %v257 = vunpack.c.l.b16 %v241
        %v258 = vpack.c.b16 %v251, %v250
        %v259 = vpack.c.b16 %v253, %v252
        %v260 = vpack.c.b16 %v255, %v254
        %v261 = vpack.c.b16 %v257, %v256
        %vm262 = vcmask 523264
        %v264 = vsel %vm262, %v258, 0
        %v267 = vsel %vm262, %v259, 0
        %v270 = vsel %vm262, %v260, 0
        %v273 = vsel %vm262, %v261, 0
        %275 = vmatprep.subr.bf16.mxu0 %v193
        %276 = vmatpush1.bf16.msra.mxu0 %v192
        %277 = vmatprep.subr.bf16.mxu0 %v206
        %278 = vmatpush1.bf16.msra.mxu0 %v205
        %279 = vmatprep.subr.bf16.mxu0 %v218
        %280 = vmatpush1.bf16.msra.mxu0 %v217
        %281 = vmatprep.subr.bf16.mxu0 %v230
        %282 = vmatpush1.bf16.msra.mxu0 %v229
        %283 = vmatprep.subr.bf16.mxu0 0
        %284 = vmatpush1.bf16.msra.mxu0 0
        %285 = vmatprep.subr.bf16.mxu0 0
        %286 = vmatpush1.bf16.msra.mxu0 0
        %287 = vmatprep.subr.bf16.mxu0 0
        %288 = vmatpush1.bf16.msra.mxu0 0
        %289 = vmatprep.subr.bf16.mxu0 0
        %290 = vmatpush1.bf16.msra.mxu0 0
        %291 = vmatprep.subr.bf16.mxu0 0
        %292 = vmatpush1.bf16.msra.mxu0 0
        %293 = vmatprep.subr.bf16.mxu0 0
        %294 = vmatpush1.bf16.msra.mxu0 0
        %295 = vmatprep.subr.bf16.mxu0 0
        %296 = vmatpush1.bf16.msra.mxu0 0
        %297 = vmatprep.subr.bf16.mxu0 0
        %298 = vmatpush1.bf16.msra.mxu0 0
        %299 = vmatprep.subr.bf16.mxu0 0
        %300 = vmatpush1.bf16.msra.mxu0 0
        %301 = vmatprep.subr.bf16.mxu0 0
        %302 = vmatpush1.bf16.msra.mxu0 0
        %303 = vmatprep.subr.bf16.mxu0 0
        %304 = vmatpush1.bf16.msra.mxu0 0
        %305 = vmatprep.subr.bf16.mxu0 0
        %306 = vmatpush1.bf16.msra.mxu0 0
        %307 = vmatprep.mubr.bf16.mxu0 0
        %308 = vmatmul.mubr.bf16.gmra.mrb[0].mxu0 %v264
        %v309 = vpop.f32.mrb[0].mxu0
        %v310 = vadd.f32 0.0, %v309
        %v311 = vpop.f32.mrb[0].mxu0
        %v312 = vadd.f32 0.0, %v311
        %v313 = vpop.f32.mrb[0].mxu0
        %v314 = vadd.f32 0.0, %v313
        %v315 = vpop.f32.mrb[0].mxu0
        %v316 = vadd.f32 0.0, %v315
        %317 = vmatprep.mubr.bf16.mxu0 0
        %318 = vmatmul.mubr.bf16.gmra.mrb[0].mxu0 %v267
        %v319 = vpop.f32.mrb[0].mxu0
        %v320 = vadd.f32 0.0, %v319
        %v321 = vpop.f32.mrb[0].mxu0
        %v322 = vadd.f32 0.0, %v321
        %v323 = vpop.f32.mrb[0].mxu0
        %v324 = vadd.f32 0.0, %v323
        %v325 = vpop.f32.mrb[0].mxu0
        %v326 = vadd.f32 0.0, %v325
        %327 = vmatprep.mubr.bf16.mxu0 0
        %328 = vmatmul.mubr.bf16.gmra.mrb[0].mxu0 %v270
        %v329 = vpop.f32.mrb[0].mxu0
        %v330 = vadd.f32 0.0, %v329
        %v331 = vpop.f32.mrb[0].mxu0
        %v332 = vadd.f32 0.0, %v331
        %v333 = vpop.f32.mrb[0].mxu0
        %v334 = vadd.f32 0.0, %v333
        %v335 = vpop.f32.mrb[0].mxu0
        %v336 = vadd.f32 0.0, %v335
        %337 = vmatprep.mubr.bf16.mxu0 0
        %338 = vmatmul.mubr.bf16.gmra.mrb[0].mxu0 %v273
        %v339 = vpop.f32.mrb[0].mxu0
        %v340 = vadd.f32 0.0, %v339
        %v341 = vpop.f32.mrb[0].mxu0
        %v342 = vadd.f32 0.0, %v341
        %v343 = vpop.f32.mrb[0].mxu0
        %v344 = vadd.f32 0.0, %v343
        %v345 = vpop.f32.mrb[0].mxu0
        %v346 = vadd.f32 0.0, %v345
        %347 = vdwg.mxu0
        %348 = vmatprep.subr.bf16.mxu0 0
        %349 = vmatpush1.bf16.msra.mxu0 %v194
        %350 = vmatprep.subr.bf16.mxu0 0
        %351 = vmatpush1.bf16.msra.mxu0 %v203
        %352 = vmatprep.subr.bf16.mxu0 0
        %353 = vmatpush1.bf16.msra.mxu0 %v215
        %354 = vmatprep.subr.bf16.mxu0 0
        %355 = vmatpush1.bf16.msra.mxu0 %v227
        %356 = vmatprep.subr.bf16.mxu0 0
        %357 = vmatpush1.bf16.msra.mxu0 0
        %358 = vmatprep.subr.bf16.mxu0 0
        %359 = vmatpush1.bf16.msra.mxu0 0
        %360 = vmatprep.subr.bf16.mxu0 0
        %361 = vmatpush1.bf16.msra.mxu0 0
        %362 = vmatprep.subr.bf16.mxu0 0
        %363 = vmatpush1.bf16.msra.mxu0 0
        %364 = vmatprep.subr.bf16.mxu0 0
        %365 = vmatpush1.bf16.msra.mxu0 0
        %366 = vmatprep.subr.bf16.mxu0 0
        %367 = vmatpush1.bf16.msra.mxu0 0
        %368 = vmatprep.subr.bf16.mxu0 0
        %369 = vmatpush1.bf16.msra.mxu0 0
        %370 = vmatprep.subr.bf16.mxu0 0
        %371 = vmatpush1.bf16.msra.mxu0 0
        %372 = vmatprep.subr.bf16.mxu0 0
        %373 = vmatpush1.bf16.msra.mxu0 0
        %374 = vmatprep.subr.bf16.mxu0 0
        %375 = vmatpush1.bf16.msra.mxu0 0
        %376 = vmatprep.subr.bf16.mxu0 0
        %377 = vmatpush1.bf16.msra.mxu0 0
        %378 = vmatprep.subr.bf16.mxu0 0
        %379 = vmatpush1.bf16.msra.mxu0 0
        %380 = vmatprep.mubr.bf16.mxu0 0
        %381 = vmatmul.mubr.bf16.gmra.mrb[0].mxu0 %v264
        %v382 = vpop.f32.mrb[0].mxu0
        %v383 = vadd.f32 0.0, %v382
        %v384 = vpop.f32.mrb[0].mxu0
        %v385 = vpop.f32.mrb[0].mxu0
        %v386 = vadd.f32 0.0, %v385
        %v387 = vpop.f32.mrb[0].mxu0
        %388 = vmatprep.mubr.bf16.mxu0 0
        %389 = vmatmul.mubr.bf16.gmra.mrb[0].mxu0 %v267
        %v390 = vpop.f32.mrb[0].mxu0
        %v391 = vadd.f32 0.0, %v390
        %v392 = vpop.f32.mrb[0].mxu0
        %v393 = vpop.f32.mrb[0].mxu0
        %v394 = vadd.f32 0.0, %v393
        %v395 = vpop.f32.mrb[0].mxu0
        %396 = vmatprep.mubr.bf16.mxu0 0
        %397 = vmatmul.mubr.bf16.gmra.mrb[0].mxu0 %v270
        %v398 = vpop.f32.mrb[0].mxu0
        %v399 = vadd.f32 0.0, %v398
        %v400 = vpop.f32.mrb[0].mxu0
        %v401 = vpop.f32.mrb[0].mxu0
        %v402 = vadd.f32 0.0, %v401
        %v403 = vpop.f32.mrb[0].mxu0
        %404 = vmatprep.mubr.bf16.mxu0 0
        %405 = vmatmul.mubr.bf16.gmra.mrb[0].mxu0 %v273
        %v406 = vpop.f32.mrb[0].mxu0
        %v407 = vadd.f32 0.0, %v406
        %v408 = vpop.f32.mrb[0].mxu0
        %v409 = vpop.f32.mrb[0].mxu0
        %v410 = vadd.f32 0.0, %v409
        %v411 = vpop.f32.mrb[0].mxu0
        %412 = vdwg.mxu0
        %v413 = vadd.f32 %v310, 3.0
        %v414 = vadd.f32 %v312, 3.0
        %v415 = vadd.f32 %v383, 3.0
        %v416 = vadd.f32 %v314, 3.0
        %v417 = vadd.f32 %v316, 3.0
        %v418 = vadd.f32 %v386, 3.0
        %v419 = vadd.f32 %v320, 3.0
        %v420 = vadd.f32 %v322, 3.0
        %v421 = vadd.f32 %v391, 3.0
        %v422 = vadd.f32 %v324, 3.0
        %v423 = vadd.f32 %v326, 3.0
        %v424 = vadd.f32 %v394, 3.0
        %v425 = vadd.f32 %v330, 3.0
        %v426 = vadd.f32 %v332, 3.0
        %v427 = vadd.f32 %v399, 3.0
        %v428 = vadd.f32 %v334, 3.0
        %v429 = vadd.f32 %v336, 3.0
        %v430 = vadd.f32 %v402, 3.0
        %v431 = vadd.f32 %v340, 3.0
        %v432 = vadd.f32 %v342, 3.0
        %v433 = vadd.f32 %v407, 3.0
        %v434 = vadd.f32 %v344, 3.0
        %v435 = vadd.f32 %v346, 3.0
        %v436 = vadd.f32 %v410, 3.0
        %v437 = vmax.f32 %v413, 0.0
        %v438 = vmax.f32 %v414, 0.0
        %v439 = vmax.f32 %v415, 0.0
        %v440 = vmax.f32 %v416, 0.0
        %v441 = vmax.f32 %v417, 0.0
        %v442 = vmax.f32 %v418, 0.0
        %v443 = vmax.f32 %v419, 0.0
        %v444 = vmax.f32 %v420, 0.0
        %v445 = vmax.f32 %v421, 0.0
        %v446 = vmax.f32 %v422, 0.0
        %v447 = vmax.f32 %v423, 0.0
        %v448 = vmax.f32 %v424, 0.0
        %v449 = vmax.f32 %v425, 0.0
        %v450 = vmax.f32 %v426, 0.0
        %v451 = vmax.f32 %v427, 0.0
        %v452 = vmax.f32 %v428, 0.0
        %v453 = vmax.f32 %v429, 0.0
        %v454 = vmax.f32 %v430, 0.0
        %v455 = vmax.f32 %v431, 0.0
        %v456 = vmax.f32 %v432, 0.0
        %v457 = vmax.f32 %v433, 0.0
        %v458 = vmax.f32 %v434, 0.0
        %v459 = vmax.f32 %v435, 0.0
        %v460 = vmax.f32 %v436, 0.0
        %v461 = vmin.f32 %v437, 6.0
        %v462 = vmin.f32 %v438, 6.0
        %v463 = vmin.f32 %v439, 6.0
        %v464 = vmin.f32 %v440, 6.0
        %v465 = vmin.f32 %v441, 6.0
        %v466 = vmin.f32 %v442, 6.0
        %v467 = vmin.f32 %v443, 6.0
        %v468 = vmin.f32 %v444, 6.0
        %v469 = vmin.f32 %v445, 6.0
        %v470 = vmin.f32 %v446, 6.0
        %v471 = vmin.f32 %v447, 6.0
        %v472 = vmin.f32 %v448, 6.0
        %v473 = vmin.f32 %v449, 6.0
        %v474 = vmin.f32 %v450, 6.0
        %v475 = vmin.f32 %v451, 6.0
        %v476 = vmin.f32 %v452, 6.0
        %v477 = vmin.f32 %v453, 6.0
        %v478 = vmin.f32 %v454, 6.0
        %v479 = vmin.f32 %v455, 6.0
        %v480 = vmin.f32 %v456, 6.0
        %v481 = vmin.f32 %v457, 6.0
        %v482 = vmin.f32 %v458, 6.0
        %v483 = vmin.f32 %v459, 6.0
        %v484 = vmin.f32 %v460, 6.0
        %v485 = vmul.f32 %v310, %v461
        %v486 = vmul.f32 %v312, %v462
        %v487 = vmul.f32 %v383, %v463
        %v488 = vmul.f32 %v314, %v464
        %v489 = vmul.f32 %v316, %v465
        %v490 = vmul.f32 %v386, %v466
        %v491 = vmul.f32 %v320, %v467
        %v492 = vmul.f32 %v322, %v468
        %v493 = vmul.f32 %v391, %v469
        %v494 = vmul.f32 %v324, %v470
        %v495 = vmul.f32 %v326, %v471
        %v496 = vmul.f32 %v394, %v472
        %v497 = vmul.f32 %v330, %v473
        %v498 = vmul.f32 %v332, %v474
        %v499 = vmul.f32 %v399, %v475
        %v500 = vmul.f32 %v334, %v476
        %v501 = vmul.f32 %v336, %v477
        %v502 = vmul.f32 %v402, %v478
        %v503 = vmul.f32 %v340, %v479
        %v504 = vmul.f32 %v342, %v480
        %v505 = vmul.f32 %v407, %v481
        %v506 = vmul.f32 %v344, %v482
        %v507 = vmul.f32 %v346, %v483
        %v508 = vmul.f32 %v410, %v484
        %v509 = vmul.f32 %v485, 0.16666667
        %v510 = vmul.f32 %v486, 0.16666667
        %v511 = vmul.f32 %v487, 0.16666667
        %v512 = vmul.f32 %v488, 0.16666667
        %v513 = vmul.f32 %v489, 0.16666667
        %v514 = vmul.f32 %v490, 0.16666667
        %v515 = vmul.f32 %v491, 0.16666667
        %v516 = vmul.f32 %v492, 0.16666667
        %v517 = vmul.f32 %v493, 0.16666667
        %v518 = vmul.f32 %v494, 0.16666667
        %v519 = vmul.f32 %v495, 0.16666667
        %v520 = vmul.f32 %v496, 0.16666667
        %v521 = vmul.f32 %v497, 0.16666667
        %v522 = vmul.f32 %v498, 0.16666667
        %v523 = vmul.f32 %v499, 0.16666667
        %v524 = vmul.f32 %v500, 0.16666667
        %v525 = vmul.f32 %v501, 0.16666667
        %v526 = vmul.f32 %v502, 0.16666667
        %v527 = vmul.f32 %v503, 0.16666667
        %v528 = vmul.f32 %v504, 0.16666667
        %v529 = vmul.f32 %v505, 0.16666667
        %v530 = vmul.f32 %v506, 0.16666667
        %v531 = vmul.f32 %v507, 0.16666667
        %v532 = vmul.f32 %v508, 0.16666667
        %533 = vst [vmem:[%s176] sm:$0xff] %v509
        %534 = vst [vmem:[%s176 + $0x8] sm:$0xff] %v510
        %vm535 = vcmask 850944
        %536 = vst.msk [vmem:[%s176 + $0x10] sm:$0xff] %vm535, %v511
        %537 = vst [vmem:[%s176 + $0x18] sm:$0xff] %v512
        %538 = vst [vmem:[%s176 + $0x20] sm:$0xff] %v513
        %539 = vst.msk [vmem:[%s176 + $0x28] sm:$0xff] %vm535, %v514
        %540 = vst [vmem:[%s176 + $0x30] sm:$0xff] %v515
        %541 = vst [vmem:[%s176 + $0x38] sm:$0xff] %v516
        %542 = vst.msk [vmem:[%s176 + $0x40] sm:$0xff] %vm535, %v517
        %543 = vst [vmem:[%s176 + $0x48] sm:$0xff] %v518
        %544 = vst [vmem:[%s176 + $0x50] sm:$0xff] %v519
        %545 = vst.msk [vmem:[%s176 + $0x58] sm:$0xff] %vm535, %v520
        %546 = vst [vmem:[%s176 + $0x60] sm:$0xff] %v521
        %547 = vst [vmem:[%s176 + $0x68] sm:$0xff] %v522
        %548 = vst.msk [vmem:[%s176 + $0x70] sm:$0xff] %vm535, %v523
        %549 = vst [vmem:[%s176 + $0x78] sm:$0xff] %v524
        %550 = vst [vmem:[%s176 + $0x80] sm:$0xff] %v525
        %551 = vst.msk [vmem:[%s176 + $0x88] sm:$0xff] %vm535, %v526
        %552 = vst [vmem:[%s176 + $0x90] sm:$0xff] %v527
        %553 = vst [vmem:[%s176 + $0x98] sm:$0xff] %v528
        %554 = vst.msk [vmem:[%s176 + $0xa0] sm:$0xff] %vm535, %v529
        %555 = vst [vmem:[%s176 + $0xa8] sm:$0xff] %v530
        %556 = vst [vmem:[%s176 + $0xb0] sm:$0xff] %v531
        %557 = vst.msk [vmem:[%s176 + $0xb8] sm:$0xff] %vm535, %v532
        %s558 = sand.u32 %s75, 1
        %s559 = scalar_lea.sflag [#allocation4], %s558
        %s560 = sand.u32 %s75, 1
        %s561 = smul.addr %s560, 192
        %s562 = scalar_lea.vmem [#allocation7], %s561
        // Predicated region
        $region37: #{model_forward.1} parent=27 // pred_check
          %p563 = pneg %p85
        $region38: #{model_forward.1} parent=27 // pred_check_branch
          %565 = sbr.rel (%p563) target = $region40
        $region39: #{model_forward.1} parent=27 // pred_region
          %s567 = ssub.s32 3072, 3072
          %568 = vsyncadd %s559, %s567
          %s569 = smul.addr %s20, 24
          %s570 = smul.addr %s569, 128
          %s571 = scalar_lea.hbm %s2, %s570
          %s572 = sshll.u32 %s562, 4
          %s573 = int_to_ptr.vmem [resolvable:$true] %s572
          %578 = dma.vmem_to_hbm [thread:$0]  %s573, 3072, %s571, %s559, 384, 384, 24
        $region40: #{model_forward.1} parent=27 // pred_fallthru
          _
      $region28: #{model_forward.1} parent=5 // pred_fallthru
        _
      %p579 = scmp.le.s32.totalorder 2, %s15
      // Predicated region
      $region41: #{model_forward.1} parent=5 // pred_check
        %p580 = pneg %p579
      $region42: #{model_forward.1} parent=5 // pred_check_branch
        %582 = sbr.rel (%p580) target = $region44
      $region43: #{model_forward.1} parent=5 // pred_region
        %s583 = ssub.s32 %s15, 2
        // Predicated region
        $region45: #{model_forward.1} parent=43 // pred_check
          %p584 = pneg %p91
        $region46: #{model_forward.1} parent=43 // pred_check_branch
          %586 = sbr.rel (%p584) target = $region48
        $region47: #{model_forward.1} parent=43 // pred_region
          %s587 = sand.u32 %s76, 1
          %s588 = scalar_lea.sflag [#allocation4], %s587
          %s589 = sand.u32 %s76, 1
          %s590 = smul.addr %s589, 192
          %s591 = scalar_lea.vmem [#allocation7], %s590
          %592 = dma.done %s588, 3072
        $region48: #{model_forward.1} parent=43 // pred_fallthru
          _
      $region44: #{model_forward.1} parent=5 // pred_fallthru
        _
    $region6: #{model_forward.1} parent=1 // loop_footer
      %s19 = sadd.s32 1, %s15
    $region7: #{model_forward.1} parent=1 // loop_footer_branch
      %14 = sbr.rel target = $region3
    $region8: #{model_forward.1} parent=1 // loop_exit
      _
    %593 = vsyncpa [#allocation3], 1
    %s594 = scalar_lea.sflag [#allocation3], 1
    %595 = vsyncpa %s594, 1
    %596 = vsyncpa [#allocation6], 1
    %597 = vsyncpa [#allocation4], 1
    %s598 = scalar_lea.sflag [#allocation4], 1
    %599 = vsyncpa %s598, 1

</llo_original>
